<compile_context>
chip_gen: v6e
topology: v6e:2x2x1
jax: 0.10.0
libtpu: 0.0.40
codegen_flags: <defaults>
</compile_context>

<pallas_src>
import functools

import jax
import jax.numpy as jnp
from jax.experimental import pallas as pl
from jax.experimental.pallas import tpu as pltpu


def _label_smoothing_kernel(x_ref, t_ref, o_ref, acc_ref, *,
                            confidence, smoothing, n_total, tn, tiles_per_core):
    p = pl.program_id(0)            # core (parallel) axis
    i = pl.program_id(1)            # per-core row-tile index (reduction axis)
    g = p * tiles_per_core + i      # global row-tile index

    @pl.when(i == 0)
    def _init():
        acc_ref[...] = jnp.zeros_like(acc_ref)

    x = x_ref[...].astype(jnp.float32)   # (TN, C) logits; f32 math for softmax
    t = t_ref[...]                       # (TN, C) target scores, native dtype
    rows, c = x.shape

    # Mask for rows that actually exist (last tile may be partial; trailing
    # spill-over tiles on the second core are fully masked).
    row_ids = g * tn + jax.lax.broadcasted_iota(jnp.int32, (rows, 1), 0)
    valid = row_ids < n_total                                         # (TN, 1)

    # argmax(target, -1) with "first max wins" semantics (matches torch.argmax)
    lane = jax.lax.broadcasted_iota(jnp.int32, (rows, c), 1)
    t_max = jnp.max(t, axis=-1, keepdims=True)
    idx = jnp.min(jnp.where(t == t_max, lane, c), axis=-1, keepdims=True)

    # log-sum-exp pieces of log_softmax(x, -1); logprobs = shifted - lse
    x_max = jnp.max(x, axis=-1, keepdims=True)
    shifted = x - x_max                                               # (TN, C)
    lse = jnp.log(jnp.sum(jnp.exp(shifted), axis=-1, keepdims=True))  # (TN, 1)

    # loss_row = conf*nll + smooth*smooth_loss
    #          = lse - [conf*shifted[idx] + (smooth/C)*sum(shifted)]
    # (uses confidence + smoothing == 1, true by construction of the module)
    w_hit = confidence + smoothing / float(c)
    w_miss = smoothing / float(c)
    w = jnp.where(lane == idx, w_hit, w_miss)                         # (TN, C)
    wsum = jnp.sum(w * shifted, axis=-1, keepdims=True)               # (TN, 1)
    loss = lse - wsum                                                 # (TN, 1)

    # Keep the select form: padded rows may contain garbage (even NaN/Inf);
    # a select drops them, a multiply-by-mask would not.
    tile_sum = jnp.sum(jnp.where(valid, loss, 0.0), axis=0, keepdims=True)
    acc_ref[...] = acc_ref[...] + tile_sum

    @pl.when(i == pl.num_programs(1) - 1)
    def _finalize():
        o_ref[...] = acc_ref[...]   # per-core partial sum; mean taken in wrapper


def _vmem_capacity_bytes():
    try:
        return int(pltpu.get_tpu_info().vmem_capacity_bytes)
    except Exception:
        return 64 * 1024 * 1024     # conservative fallback: v7x per-TC VMEM


def _choose_tile_rows(n, c, itemsize, tile_budget_bytes):
    """Largest multiple-of-8 row tile within the per-input tile byte budget."""
    bytes_per_row = max(c, 1) * max(itemsize, 1)
    budget_rows = max(8, tile_budget_bytes // bytes_per_row)
    if n <= budget_rows:
        # Single tile: block dims == full array dims is always a legal block.
        return n
    return max(8, (budget_rows // 8) * 8)


def label_smoothing_loss(x, target, smoothing=0.5):
    confidence = 1.0 - smoothing
    n, c = x.shape

    x_item = jnp.dtype(x.dtype).itemsize
    t_item = jnp.dtype(target.dtype).itemsize

    # Generation-aware VMEM budgeting: keep headroom for Mosaic internal
    # scratch, then split among 2 inputs x 2 pipeline buffers (+ slack).
    vmem_cap = _vmem_capacity_bytes()                 # 64 MiB v7x, 128 MiB v5e/v6e
    usable = max(32 << 20, vmem_cap - (16 << 20))
    tile_budget = min(16 << 20, usable // 5)          # per-input-tile byte budget

    tn = _choose_tile_rows(n, c, max(x_item, t_item), tile_budget)
    num_tiles = pl.cdiv(n, tn)

    # Split row tiles across both TensorCores on v7x; harmless serial split on
    # single-TC chips.
    num_cores = 2 if num_tiles >= 2 else 1
    tiles_per_core = pl.cdiv(num_tiles, num_cores)

    def in_index_map(p, i):
        g = p * tiles_per_core + i
        # Clamp so trailing spill-over steps re-read the last valid block
        # (never an OOB DMA); their rows fail the row_ids < n mask anyway.
        return (jnp.minimum(g, num_tiles - 1), 0)

    kernel = functools.partial(
        _label_smoothing_kernel,
        confidence=float(confidence),   # plain Python numbers: fold to immediates
        smoothing=float(smoothing),
        n_total=int(n),
        tn=int(tn),
        tiles_per_core=int(tiles_per_core),
    )

    # 2 pipeline buffers per input tile, plus headroom, clamped to the chip.
    buf_bytes = 2 * tn * c * (x_item + t_item)
    vmem_limit = int(min(max(16 << 20, buf_bytes + (8 << 20)),
                         vmem_cap - (8 << 20)))

    partial_sums = pl.pallas_call(
        kernel,
        out_shape=jax.ShapeDtypeStruct((num_cores, 1), jnp.float32),
        grid_spec=pltpu.PrefetchScalarGridSpec(
            num_scalar_prefetch=0,
            grid=(num_cores, tiles_per_core),
            in_specs=[
                pl.BlockSpec((tn, c), in_index_map),
                pl.BlockSpec((tn, c), in_index_map),
            ],
            out_specs=pl.BlockSpec((1, 1), lambda p, i: (p, 0)),
            scratch_shapes=[pltpu.VMEM((1, 1), jnp.float32)],
        ),
        compiler_params=pltpu.CompilerParams(
            dimension_semantics=("parallel", "arbitrary"),
            vmem_limit_bytes=vmem_limit,
        ),
    )(x, target)

    return jnp.sum(partial_sums) / jnp.float32(n)


def _reference(x, target, smoothing=0.5):
    confidence = 1.0 - smoothing
    idx = jnp.argmax(target, axis=-1)
    logprobs = jax.nn.log_softmax(x.astype(jnp.float32), axis=-1)
    nll = -jnp.take_along_axis(logprobs, idx[:, None], axis=-1)[:, 0]
    smooth = -jnp.mean(logprobs, axis=-1)
    return jnp.mean(confidence * nll + smoothing * smooth)


if __name__ == "__main__":
    key = jax.random.PRNGKey(0)
    kx, kt = jax.random.split(key)
    N, C = 8, 32
    x = jax.random.normal(kx, (N, C), dtype=jnp.float32)
    # target scores; argmax over last axis defines the class label
    target = jax.random.normal(kt, (N, C), dtype=jnp.float32)

    loss = label_smoothing_loss(x, target, smoothing=0.5)
    jax.block_until_ready(loss)

    ref = _reference(x, target, smoothing=0.5)
    assert jnp.allclose(loss, ref, atol=1e-5, rtol=1e-5), (loss, ref)
    print("KERNEL_OK")
</pallas_src>

<mosaic_0001>
module attributes {stable_mosaic.version = 11 : i64} {
  func.func @_label_smoothing_kernel(%arg0: i32, %arg1: i32, %arg2: memref<8x32xf32, #tpu.memory_space<vmem>>, %arg3: memref<8x32xf32, #tpu.memory_space<vmem>>, %arg4: memref<1x1xf32, #tpu.memory_space<vmem>>, %arg5: memref<1x1xf32, #tpu.memory_space<vmem>>) attributes {dimension_semantics = [#tpu.dimension_semantics<parallel>, #tpu.dimension_semantics<arbitrary>], iteration_bounds = array<i64: 1, 1>, scalar_prefetch = 0 : i64, scratch_operands = 1 : i64, tpu.core_type = #tpu.core_type<tc>, window_params = [{transform_indices = @transform_0, window_bounds = array<i64: 8, 32>}, {transform_indices = @transform_1, window_bounds = array<i64: 8, 32>}, {transform_indices = @transform_2, window_bounds = array<i64: 1, 1>}]} {
    %c1_i32 = arith.constant 1 : i32
    %0 = arith.muli %arg0, %c1_i32 : i32
    %1 = arith.addi %0, %arg1 : i32
    %c0_i32 = arith.constant 0 : i32
    %2 = arith.cmpi eq, %arg1, %c0_i32 : i32
    %3 = arith.extui %2 : i1 to i32
    %c0_i32_0 = arith.constant 0 : i32
    %4 = arith.cmpi ne, %3, %c0_i32_0 : i32
    scf.if %4 {
      %cst_19 = arith.constant 0.000000e+00 : f32
      %49 = vector.broadcast %cst_19 : f32 to vector<1x1xf32>
      %c0_20 = arith.constant 0 : index
      %c0_21 = arith.constant 0 : index
      %50 = vector.load %arg5[%c0_20, %c0_21] : memref<1x1xf32, #tpu.memory_space<vmem>>, vector<1x1xf32>
      tpu.vector_store %arg5[%c0_20, %c0_21], %49 {strides = array<i32>} : memref<1x1xf32, #tpu.memory_space<vmem>>, vector<1x1xf32>,
    } else {
    }
    %c0 = arith.constant 0 : index
    %c0_1 = arith.constant 0 : index
    %5 = vector.load %arg2[%c0, %c0_1] : memref<8x32xf32, #tpu.memory_space<vmem>>, vector<8x32xf32>
    %c0_2 = arith.constant 0 : index
    %c0_3 = arith.constant 0 : index
    %6 = vector.load %arg3[%c0_2, %c0_3] : memref<8x32xf32, #tpu.memory_space<vmem>>, vector<8x32xf32>
    %c8_i32 = arith.constant 8 : i32
    %7 = arith.muli %1, %c8_i32 : i32
    %8 = tpu.iota {dimensions = array<i32: 0>} : vector<8x1xi32>
    %9 = vector.broadcast %7 : i32 to vector<8x1xi32>
    %10 = arith.addi %9, %8 : vector<8x1xi32>
    %c8_i32_4 = arith.constant 8 : i32
    %11 = vector.broadcast %c8_i32_4 : i32 to vector<8x1xi32>
    %12 = arith.cmpi slt, %10, %11 : vector<8x1xi32>
    %13 = tpu.iota {dimensions = array<i32: 1>} : vector<8x32xi32>
    %cst = arith.constant dense<0xFF800000> : vector<8xf32>
    %14 = vector.multi_reduction <maximumf>, %6, %cst [1] : vector<8x32xf32> to vector<8xf32>
    %15 = vector.shape_cast %14 : vector<8xf32> to vector<8x1xf32>
    %16 = vector.broadcast %15 : vector<8x1xf32> to vector<8x32xf32>
    %17 = arith.cmpf oeq, %6, %16 : vector<8x32xf32>
    %c32_i32 = arith.constant 32 : i32
    %18 = vector.broadcast %c32_i32 : i32 to vector<8x32xi32>
    %19 = arith.select %17, %13, %18 : vector<8x32xi1>, vector<8x32xi32>
    %cst_5 = arith.constant dense<2147483647> : vector<8xi32>
    %20 = vector.multi_reduction <minsi>, %19, %cst_5 [1] : vector<8x32xi32> to vector<8xi32>
    %21 = vector.shape_cast %20 : vector<8xi32> to vector<8x1xi32>
    %cst_6 = arith.constant dense<0xFF800000> : vector<8xf32>
    %22 = vector.multi_reduction <maximumf>, %5, %cst_6 [1] : vector<8x32xf32> to vector<8xf32>
    %23 = vector.shape_cast %22 : vector<8xf32> to vector<8x1xf32>
    %24 = vector.broadcast %23 : vector<8x1xf32> to vector<8x32xf32>
    %25 = arith.subf %5, %24 : vector<8x32xf32>
    %26 = math.exp %25 : vector<8x32xf32>
    %cst_7 = arith.constant dense<0.000000e+00> : vector<8xf32>
    %27 = vector.multi_reduction <add>, %26, %cst_7 [1] : vector<8x32xf32> to vector<8xf32>
    %28 = vector.shape_cast %27 : vector<8xf32> to vector<8x1xf32>
    %29 = math.log %28 : vector<8x1xf32>
    %30 = vector.broadcast %21 : vector<8x1xi32> to vector<8x32xi32>
    %31 = arith.cmpi eq, %13, %30 : vector<8x32xi32>
    %cst_8 = arith.constant 5.156250e-01 : f32
    %cst_9 = arith.constant 1.562500e-02 : f32
    %32 = vector.broadcast %cst_8 : f32 to vector<8x32xf32>
    %33 = vector.broadcast %cst_9 : f32 to vector<8x32xf32>
    %34 = arith.select %31, %32, %33 : vector<8x32xi1>, vector<8x32xf32>
    %35 = arith.mulf %34, %25 : vector<8x32xf32>
    %cst_10 = arith.constant dense<0.000000e+00> : vector<8xf32>
    %36 = vector.multi_reduction <add>, %35, %cst_10 [1] : vector<8x32xf32> to vector<8xf32>
    %37 = vector.shape_cast %36 : vector<8xf32> to vector<8x1xf32>
    %38 = arith.subf %29, %37 : vector<8x1xf32>
    %cst_11 = arith.constant 0.000000e+00 : f32
    %39 = vector.broadcast %cst_11 : f32 to vector<8x1xf32>
    %40 = arith.select %12, %38, %39 : vector<8x1xi1>, vector<8x1xf32>
    %cst_12 = arith.constant dense<0.000000e+00> : vector<1xf32>
    %41 = vector.multi_reduction <add>, %40, %cst_12 [0] : vector<8x1xf32> to vector<1xf32>
    %42 = vector.shape_cast %41 : vector<1xf32> to vector<1x1xf32>
    %c0_13 = arith.constant 0 : index
    %c0_14 = arith.constant 0 : index
    %43 = vector.load %arg5[%c0_13, %c0_14] : memref<1x1xf32, #tpu.memory_space<vmem>>, vector<1x1xf32>
    %44 = arith.addf %43, %42 : vector<1x1xf32>
    %c0_15 = arith.constant 0 : index
    %c0_16 = arith.constant 0 : index
    %45 = vector.load %arg5[%c0_15, %c0_16] : memref<1x1xf32, #tpu.memory_space<vmem>>, vector<1x1xf32>
    tpu.vector_store %arg5[%c0_15, %c0_16], %44 {strides = array<i32>} : memref<1x1xf32, #tpu.memory_space<vmem>>, vector<1x1xf32>,
    %c0_i32_17 = arith.constant 0 : i32
    %46 = arith.cmpi eq, %arg1, %c0_i32_17 : i32
    %47 = arith.extui %46 : i1 to i32
    %c0_i32_18 = arith.constant 0 : i32
    %48 = arith.cmpi ne, %47, %c0_i32_18 : i32
    scf.if %48 {
      %c0_19 = arith.constant 0 : index
      %c0_20 = arith.constant 0 : index
      %49 = vector.load %arg5[%c0_19, %c0_20] : memref<1x1xf32, #tpu.memory_space<vmem>>, vector<1x1xf32>
      %c0_21 = arith.constant 0 : index
      %c0_22 = arith.constant 0 : index
      %50 = vector.load %arg4[%c0_21, %c0_22] : memref<1x1xf32, #tpu.memory_space<vmem>>, vector<1x1xf32>
      tpu.vector_store %arg4[%c0_21, %c0_22], %49 {strides = array<i32>} : memref<1x1xf32, #tpu.memory_space<vmem>>, vector<1x1xf32>,
    } else {
    }
    return
  }
  func.func @transform_0(%arg0: i32, %arg1: i32) -> (i32, i32) {
    %c1_i32 = arith.constant 1 : i32
    %0 = arith.muli %arg0, %c1_i32 : i32
    %1 = arith.addi %0, %arg1 : i32
    %c0_i32 = arith.constant 0 : i32
    %2 = arith.minsi %1, %c0_i32 : i32
    %c0_i32_0 = arith.constant 0 : i32
    %c0_i32_1 = arith.constant 0 : i32
    return %2, %c0_i32_0 : i32, i32
  }
  func.func @transform_1(%arg0: i32, %arg1: i32) -> (i32, i32) {
    %c1_i32 = arith.constant 1 : i32
    %0 = arith.muli %arg0, %c1_i32 : i32
    %1 = arith.addi %0, %arg1 : i32
    %c0_i32 = arith.constant 0 : i32
    %2 = arith.minsi %1, %c0_i32 : i32
    %c0_i32_0 = arith.constant 0 : i32
    %c0_i32_1 = arith.constant 0 : i32
    return %2, %c0_i32_0 : i32, i32
  }
  func.func @transform_2(%arg0: i32, %arg1: i32) -> (i32, i32) {
    %c0_i32 = arith.constant 0 : i32
    %c0_i32_0 = arith.constant 0 : i32
    return %arg0, %c0_i32 : i32, i32
  }
}

</mosaic_0001>

<llo_original>
// kernel: tpu_custom_call.1
$region0: #{tpu_custom_call.1}
  #allocation0 [shape = 'u32[]', space=smem, size = 0x4, offset = 0x4, fixed_abs, tag = 'smem constant byte address 0x4 - core index']
  #allocation1 [shape = 'u32[144,128]{1,0:T(1,128)}', space=vmem, size = 0x12000, scoped, tag = 'internal scratch']
  #allocation2 [shape = 'f32[1,1]{1,0:T(1,128)}', space=vmem, size = 0x200, scoped, tag = 'scratch operand']
  %s0 = inlined_call_operand.hbm [shape: f32[8,32], index: 0, kind: input, shape index: {}]
  %s1 = inlined_call_operand.hbm [shape: f32[8,32], index: 1, kind: input, shape index: {}]
  %s2 = inlined_call_operand.hbm [shape: f32[1,1], index: 2, kind: output, shape index: {}]
  %s3 = sld [smem:[#allocation0]]
  $region34: #{tpu_custom_call.1} parent=0
    _
  %s5 = ssub.s32 1, %s3
  %s6 = scalar_select 0, %s5, %s3
  $region1: #{tpu_custom_call.1} parent=0
    #allocation3 [shape = 'u8[4096]{0}', space=vmem, size = 0x1000, scoped, tag = 'input window, operand 0, single buffered']
    #allocation4 [shape = 's32[1]{0}', space=sflag, size = 0x4, scoped, tag = 'scoped memory for tpu_custom_call.1']
    #allocation5 [shape = 's32[1]{0}', space=sflag, size = 0x4, scoped, tag = 'scoped memory for tpu_custom_call.1']
    #allocation6 [shape = 'u8[4096]{0}', space=vmem, size = 0x1000, scoped, tag = 'input window, operand 1, single buffered']
    #allocation7 [shape = 's32[1]{0}', space=sflag, size = 0x4, scoped, tag = 'scoped memory for tpu_custom_call.1']
    #allocation8 [shape = 'u8[512]{0}', space=vmem, size = 0x400, scoped, tag = 'output window, operand 0, single buffered']
    %7 = vsyncpa [#allocation4], 0
    %8 = vsyncpa [#allocation7], 0
    %9 = vsyncpa [#allocation5], 0
    // Predicated region
    $region2: #{tpu_custom_call.1} parent=1 // pred_check
      _
    $region3: #{tpu_custom_call.1} parent=1 // pred_check_branch
      %11 = sbr.rel (0) target = $region5
    $region4: #{tpu_custom_call.1} parent=1 // pred_region
      %s12 = sadd.s32 0, 0
      %p13 = scmp.lt.s32.totalorder %s12, 0
      %s14 = scalar_select %p13, %s12, 0
      %s16 = ssub.s32 128, 128
      %17 = vsyncadd [#allocation4], %s16
      %s18 = smul.addr %s14, 128
      %s19 = scalar_lea.hbm %s0, %s18
      %s21 = sshll.u32 [#allocation3], 4
      %s22 = int_to_ptr.vmem [resolvable:$true] %s21
      %24 = dma.hbm_to_vmem [thread:$0]  %s19, 128, %s22, [#allocation4]
    $region5: #{tpu_custom_call.1} parent=1 // pred_fallthru
      _
    // Predicated region
    $region6: #{tpu_custom_call.1} parent=1 // pred_check
      _
    $region7: #{tpu_custom_call.1} parent=1 // pred_check_branch
      %26 = sbr.rel (0) target = $region9
    $region8: #{tpu_custom_call.1} parent=1 // pred_region
      %s27 = sadd.s32 0, 0
      %p28 = scmp.lt.s32.totalorder %s27, 0
      %s29 = scalar_select %p28, %s27, 0
      %s31 = ssub.s32 128, 128
      %32 = vsyncadd [#allocation7], %s31
      %s33 = smul.addr %s29, 128
      %s34 = scalar_lea.hbm %s1, %s33
      %s36 = sshll.u32 [#allocation6], 4
      %s37 = int_to_ptr.vmem [resolvable:$true] %s36
      %39 = dma.hbm_to_vmem [thread:$0]  %s34, 128, %s37, [#allocation7]
    $region9: #{tpu_custom_call.1} parent=1 // pred_fallthru
      _
    // Predicated region
    $region10: #{tpu_custom_call.1} parent=1 // pred_check
      _
    $region11: #{tpu_custom_call.1} parent=1 // pred_check_branch
      %41 = sbr.rel (0) target = $region13
    $region12: #{tpu_custom_call.1} parent=1 // pred_region
      %42 = dma.done [#allocation4], 128
    $region13: #{tpu_custom_call.1} parent=1 // pred_fallthru
      _
    // Predicated region
    $region14: #{tpu_custom_call.1} parent=1 // pred_check
      _
    $region15: #{tpu_custom_call.1} parent=1 // pred_check_branch
      %44 = sbr.rel (0) target = $region17
    $region16: #{tpu_custom_call.1} parent=1 // pred_region
      %45 = dma.done [#allocation7], 128
    $region17: #{tpu_custom_call.1} parent=1 // pred_fallthru
      _
    %s46 = sadd.s32 0, 0
    %p47 = scmp.lt.s32.totalorder %s46, 0
    %s48 = scalar_select %p47, %s46, 0
    %s49 = sadd.s32 0, 0
    %p50 = scmp.lt.s32.totalorder %s49, 0
    %s51 = scalar_select %p50, %s49, 0
    %s52 = sadd.s32 0, 0
    %p53 = scmp.eq.s32.totalorder 0, 0
    // Predicated region
    $region18: #{tpu_custom_call.1} parent=1 // pred_check
      %p54 = pneg %p53
    $region19: #{tpu_custom_call.1} parent=1 // pred_check_branch
      %56 = sbr.rel (%p54) target = $region21
    $region20: #{tpu_custom_call.1} parent=1 // pred_region
      %vm57 = vcmask 0
      %58 = vst.msk [vmem:[#allocation2] sm:$0x1] %vm57, 0.0
    $region21: #{tpu_custom_call.1} parent=1 // pred_fallthru
      _
    %v59 = vld [vmem:[#allocation3] sm:$0xff]
    %v60 = vld [vmem:[#allocation6] sm:$0xff]
    %s61 = smul.u32 %s52, 8
    %v62 = vlaneseq
    %v63 = vshrl.u32 %v62, 7
    %v64 = vstv %s61
    %v65 = vadd.s32 %v64, %v63
    %vm66 = vcmp.lt.s32.totalorder %v65, 8
    %v67 = vlaneseq
    %v68 = vand.u32 %v67, 127
    %vm69 = vcmask 261120
    %v70 = vsel %vm69, %v60, -inf
    %71 = vmax.xlane.f32.xlu0 %v70
    %v72 = vpop.xlane.xlu0 %71
    %vm73 = vcmp.eq.f32.partialorder %v60, %v72
    %v74 = vsel %vm73, %v68, 32
    %v75 = vsel %vm69, %v74, 2147483647
    %v76 = vand.u32 %v75, 65535
    %v77 = vshra.s32 %v75, 16
    %v78 = vcvt.s32.f32 %v76
    %v79 = vcvt.s32.f32 %v77
    %80 = vmin.xlane.f32.xlu0 %v79
    %v81 = vpop.xlane.xlu0 %80
    %vm82 = vcmp.eq.f32.partialorder %v79, %v81
    %v83 = vsel %vm82, %v78, inf
    %84 = vmin.xlane.f32.xlu0 %v83
    %v85 = vpop.xlane.xlu0 %84
    %v86 = vcvt.f32.s32 %v85
    %v87 = vcvt.f32.s32 %v81
    %v88 = vshll.u32 %v87, 16
    %v89 = vadd.s32 %v88, %v86
    %v90 = vsel %vm69, %v59, -inf
    %91 = vmax.xlane.f32.xlu0 %v90
    %v92 = vpop.xlane.xlu0 %91
    %v93 = vsub.f32 %v59, %v92
    %v94 = vmul.f32 %v93, 1.442695
    %v95 = vpow.pop %v94
    %v96 = vsel %vm69, %v95, 0.0
    %97 = vadd.xlane.f32.xlu0 %v96
    %v98 = vpop.xlane.xlu0 %97
    %v99 = vlog2.pop %v98
    %v100 = vmul.f32 %v99, 0.6931472
    %vm101 = vcmp.eq.s32.totalorder %v68, %v89
    %v102 = vsel %vm101, 0.515625, 0.015625
    %v103 = vmul.f32 %v102, %v93
    %v104 = vsel %vm69, %v103, 0.0
    %105 = vadd.xlane.f32.xlu0 %v104
    %v106 = vpop.xlane.xlu0 %105
    %v107 = vsub.f32 %v100, %v106
    %v108 = vsel %vm66, %v107, 0.0
    %v109 = vrot.slane %v108, 4
    %v110 = vadd.f32 %v108, %v109
    %v111 = vrot.slane %v110, 2
    %v112 = vadd.f32 %v110, %v111
    %v113 = vrot.slane %v112, 1
    %v114 = vadd.f32 %v112, %v113
    %v115 = vld [vmem:[#allocation2] sm:$0x1]
    %v116 = vadd.f32 %v115, %v114
    %vm117 = vcmask 0
    %118 = vst.msk [vmem:[#allocation2] sm:$0x1] %vm117, %v116
    // Predicated region
    $region22: #{tpu_custom_call.1} parent=1 // pred_check
      %p119 = pneg %p53
    $region23: #{tpu_custom_call.1} parent=1 // pred_check_branch
      %121 = sbr.rel (%p119) target = $region25
    $region24: #{tpu_custom_call.1} parent=1 // pred_region
      %v122 = vld [vmem:[#allocation2] sm:$0x1]
      %123 = vst.msk [vmem:[#allocation8] sm:$0x1] %vm117, %v122
    $region25: #{tpu_custom_call.1} parent=1 // pred_fallthru
      _
    // Predicated region
    $region26: #{tpu_custom_call.1} parent=1 // pred_check
      _
    $region27: #{tpu_custom_call.1} parent=1 // pred_check_branch
      %125 = sbr.rel (0) target = $region29
    $region28: #{tpu_custom_call.1} parent=1 // pred_region
      %s127 = ssub.s32 16, 16
      %128 = vsyncadd [#allocation5], %s127
      %s130 = sshll.u32 [#allocation8], 4
      %s131 = int_to_ptr.vmem [resolvable:$true] %s130
      %133 = dma.vmem_to_hbm [thread:$0]  %s131, 16, %s2, [#allocation5]
    $region29: #{tpu_custom_call.1} parent=1 // pred_fallthru
      _
    // Predicated region
    $region30: #{tpu_custom_call.1} parent=1 // pred_check
      _
    $region31: #{tpu_custom_call.1} parent=1 // pred_check_branch
      %135 = sbr.rel (0) target = $region33
    $region32: #{tpu_custom_call.1} parent=1 // pred_region
      %136 = dma.done [#allocation5], 16
    $region33: #{tpu_custom_call.1} parent=1 // pred_fallthru
      _
    %137 = vsyncpa [#allocation4], 1
    %138 = vsyncpa [#allocation7], 1
    %139 = vsyncpa [#allocation5], 1

</llo_original>
